<compile_context>
chip_gen: v7x
topology: tpu7x:2x2x1
jax: 0.10.0
libtpu: 0.0.40
codegen_flags: <defaults>
</compile_context>

<pallas_src>
import jax
import jax.numpy as jnp
from jax.experimental import pallas as pl
from jax.experimental.pallas import tpu as pltpu


def se_block_kernel(x_ref, w1_ref, w2_ref, o_ref):
    # x_ref : (Nb, C, HW) tile (Nb images per grid step)
    # w1_ref: (C_mid, C)   -- conv1 weight, native layout
    # w2_ref: (C, C_mid)   -- conv2 weight, native layout
    x = x_ref[...]
    x32 = x.astype(jnp.float32)

    # Global average pool over spatial (lane-axis reduce), in f32.
    xm = jnp.mean(x32, axis=-1)                                    # (Nb, C)

    # 1x1 conv C -> C_mid on the VPU: h[b, m] = sum_c xm[b, c] * w1[m, c]
    w1 = w1_ref[...].astype(jnp.float32)                           # (C_mid, C)
    h = jnp.sum(xm[:, None, :] * w1[None, :, :], axis=-1)          # (Nb, C_mid)
    h = jnp.maximum(h, 0.0)                                        # relu

    # 1x1 conv C_mid -> C on the VPU: s[b, c] = sum_m h[b, m] * w2[c, m]
    w2 = w2_ref[...].astype(jnp.float32)                           # (C, C_mid)
    s = jnp.sum(h[:, None, :] * w2[None, :, :], axis=-1)           # (Nb, C)
    s = jax.nn.sigmoid(s)                                          # gate, EUP

    # Elementwise scale; gate broadcast over the lane (spatial) axis.
    o_ref[...] = (x32 * s[:, :, None]).astype(o_ref.dtype)


def _choose_batch_tile(N, C, HW, itemsize,
                       target_block_bytes=4 << 20,   # ~4 MiB x-block per step
                       min_grid_steps=8):
    """Pick how many images to process per grid step."""
    per_image = max(C * HW * itemsize, 1)
    nb = max(1, min(N, target_block_bytes // per_image))
    # Keep enough grid steps for pipelining / megacore sharding when possible.
    if N >= min_grid_steps:
        nb = min(nb, max(1, N // min_grid_steps))
    # Require an even split so there are no partial blocks.
    while N % nb != 0:
        nb -= 1
    return nb


def se_block(x_nchw, w1, w2):
    """x_nchw: (N, C, H, W); w1: (C_mid, C, 1, 1); w2: (C, C_mid, 1, 1)."""
    N, C, H, W = x_nchw.shape
    C_mid = w1.shape[0]
    HW = H * W
    itemsize = jnp.dtype(x_nchw.dtype).itemsize

    nb = _choose_batch_tile(N, C, HW, itemsize)
    grid = (N // nb,)

    x_flat = x_nchw.reshape(N, C, HW)
    w1_r = w1.reshape(C_mid, C)      # native layout, no transpose needed
    w2_r = w2.reshape(C, C_mid)

    w_itemsize = jnp.dtype(w1.dtype).itemsize
    cost = pl.CostEstimate(
        flops=2 * N * C * HW + 4 * N * C * C_mid,
        transcendentals=N * C,
        bytes_accessed=2 * N * C * HW * itemsize + 2 * C * C_mid * w_itemsize,
    )

    out = pl.pallas_call(
        se_block_kernel,
        out_shape=jax.ShapeDtypeStruct((N, C, HW), x_nchw.dtype),
        grid_spec=pltpu.PrefetchScalarGridSpec(
            num_scalar_prefetch=0,
            grid=grid,
            in_specs=[
                pl.BlockSpec((nb, C, HW), lambda n: (n, 0, 0)),
                pl.BlockSpec((C_mid, C), lambda n: (0, 0)),
                pl.BlockSpec((C, C_mid), lambda n: (0, 0)),
            ],
            out_specs=pl.BlockSpec((nb, C, HW), lambda n: (n, 0, 0)),
        ),
        compiler_params=pltpu.CompilerParams(
            dimension_semantics=("parallel",)),
        cost_estimate=cost,
    )(x_flat, w1_r, w2_r)

    return out.reshape(N, C, H, W)


def se_block_ref(x, w1, w2):
    """Pure-JAX reference matching the PyTorch forward."""
    x0 = jnp.mean(x, axis=(2, 3), keepdims=True)                   # (N, C, 1, 1)
    x0 = jnp.einsum('ncij,mc->nmij', x0, w1.reshape(w1.shape[0], -1))
    x0 = jax.nn.relu(x0)
    x0 = jnp.einsum('nmij,cm->ncij', x0, w2.reshape(w2.shape[0], -1))
    x0 = jax.nn.sigmoid(x0)
    return x * x0


if __name__ == "__main__":
    # Module config: in_channels=32, reduction=8 -> mid channels = 4
    N, C, H, W = 2, 32, 16, 16
    reduction = 8
    C_mid = C // reduction

    key = jax.random.PRNGKey(0)
    kx, k1, k2 = jax.random.split(key, 3)
    x = jax.random.normal(kx, (N, C, H, W), dtype=jnp.float32)
    # conv1: (C_mid, C, 1, 1), conv2: (C, C_mid, 1, 1), bias=False
    w1 = jax.random.normal(k1, (C_mid, C, 1, 1), dtype=jnp.float32) * 0.1
    w2 = jax.random.normal(k2, (C, C_mid, 1, 1), dtype=jnp.float32) * 0.1

    out = se_block(x, w1, w2)
    out = jax.block_until_ready(out)

    ref = se_block_ref(x, w1, w2)
    assert out.shape == (N, C, H, W)
    assert jnp.allclose(out, ref, atol=1e-5, rtol=1e-5), "mismatch vs reference"

    print("KERNEL_OK")
</pallas_src>

<mosaic_0001>
module attributes {stable_mosaic.version = 11 : i64} {
  func.func @se_block_kernel(%arg0: i32, %arg1: memref<2x32x256xf32, #tpu.memory_space<vmem>>, %arg2: memref<4x32xf32, #tpu.memory_space<vmem>>, %arg3: memref<32x4xf32, #tpu.memory_space<vmem>>, %arg4: memref<2x32x256xf32, #tpu.memory_space<vmem>>) attributes {dimension_semantics = [#tpu.dimension_semantics<parallel>], iteration_bounds = array<i64: 1>, scalar_prefetch = 0 : i64, scratch_operands = 0 : i64, tpu.core_type = #tpu.core_type<tc>, window_params = [{transform_indices = @transform_0, window_bounds = array<i64: 2, 32, 256>}, {pipeline_mode = #tpu.pipeline_mode<synchronous>, transform_indices = @transform_1, window_bounds = array<i64: 4, 32>}, {pipeline_mode = #tpu.pipeline_mode<synchronous>, transform_indices = @transform_2, window_bounds = array<i64: 32, 4>}, {transform_indices = @transform_3, window_bounds = array<i64: 2, 32, 256>}]} {
    %c0 = arith.constant 0 : index
    %c0_0 = arith.constant 0 : index
    %c0_1 = arith.constant 0 : index
    %0 = vector.load %arg1[%c0, %c0_0, %c0_1] : memref<2x32x256xf32, #tpu.memory_space<vmem>>, vector<2x32x256xf32>
    %cst = arith.constant dense<0.000000e+00> : vector<2x32xf32>
    %1 = vector.multi_reduction <add>, %0, %cst [2] : vector<2x32x256xf32> to vector<2x32xf32>
    %cst_2 = arith.constant 2.560000e+02 : f32
    %2 = vector.broadcast %cst_2 : f32 to vector<2x32xf32>
    %3 = arith.divf %1, %2 : vector<2x32xf32>
    %c0_3 = arith.constant 0 : index
    %c0_4 = arith.constant 0 : index
    %4 = vector.load %arg2[%c0_3, %c0_4] : memref<4x32xf32, #tpu.memory_space<vmem>>, vector<4x32xf32>
    %5 = vector.shape_cast %3 : vector<2x32xf32> to vector<2x1x32xf32>
    %6 = vector.shape_cast %4 : vector<4x32xf32> to vector<1x4x32xf32>
    %7 = vector.broadcast %5 : vector<2x1x32xf32> to vector<2x4x32xf32>
    %8 = vector.broadcast %6 : vector<1x4x32xf32> to vector<2x4x32xf32>
    %9 = arith.mulf %7, %8 : vector<2x4x32xf32>
    %cst_5 = arith.constant dense<0.000000e+00> : vector<2x4xf32>
    %10 = vector.multi_reduction <add>, %9, %cst_5 [2] : vector<2x4x32xf32> to vector<2x4xf32>
    %cst_6 = arith.constant 0.000000e+00 : f32
    %11 = vector.broadcast %cst_6 : f32 to vector<2x4xf32>
    %12 = arith.maximumf %10, %11 : vector<2x4xf32>
    %c0_7 = arith.constant 0 : index
    %c0_8 = arith.constant 0 : index
    %13 = vector.load %arg3[%c0_7, %c0_8] : memref<32x4xf32, #tpu.memory_space<vmem>>, vector<32x4xf32>
    %14 = vector.shape_cast %12 : vector<2x4xf32> to vector<2x1x4xf32>
    %15 = vector.shape_cast %13 : vector<32x4xf32> to vector<1x32x4xf32>
    %16 = vector.broadcast %14 : vector<2x1x4xf32> to vector<2x32x4xf32>
    %17 = vector.broadcast %15 : vector<1x32x4xf32> to vector<2x32x4xf32>
    %18 = arith.mulf %16, %17 : vector<2x32x4xf32>
    %cst_9 = arith.constant dense<0.000000e+00> : vector<2x32xf32>
    %19 = vector.multi_reduction <add>, %18, %cst_9 [2] : vector<2x32x4xf32> to vector<2x32xf32>
    %20 = arith.negf %19 : vector<2x32xf32>
    %21 = math.exp %20 : vector<2x32xf32>
    %cst_10 = arith.constant 1.000000e+00 : f32
    %22 = vector.broadcast %cst_10 : f32 to vector<2x32xf32>
    %23 = arith.addf %22, %21 : vector<2x32xf32>
    %24 = arith.divf %22, %23 : vector<2x32xf32>
    %25 = vector.shape_cast %24 : vector<2x32xf32> to vector<2x32x1xf32>
    %26 = vector.broadcast %25 : vector<2x32x1xf32> to vector<2x32x256xf32>
    %27 = arith.mulf %0, %26 : vector<2x32x256xf32>
    %c0_11 = arith.constant 0 : index
    %c0_12 = arith.constant 0 : index
    %c0_13 = arith.constant 0 : index
    %28 = vector.load %arg4[%c0_11, %c0_12, %c0_13] : memref<2x32x256xf32, #tpu.memory_space<vmem>>, vector<2x32x256xf32>
    tpu.vector_store %arg4[%c0_11, %c0_12, %c0_13], %27 {strides = array<i32>} : memref<2x32x256xf32, #tpu.memory_space<vmem>>, vector<2x32x256xf32>,
    return
  }
  func.func @transform_0(%arg0: i32) -> (i32, i32, i32) {
    %c0_i32 = arith.constant 0 : i32
    %c0_i32_0 = arith.constant 0 : i32
    %c0_i32_1 = arith.constant 0 : i32
    return %arg0, %c0_i32, %c0_i32_0 : i32, i32, i32
  }
  func.func @transform_1(%arg0: i32) -> (i32, i32) {
    %c0_i32 = arith.constant 0 : i32
    %c0_i32_0 = arith.constant 0 : i32
    %c0_i32_1 = arith.constant 0 : i32
    return %c0_i32, %c0_i32_0 : i32, i32
  }
  func.func @transform_2(%arg0: i32) -> (i32, i32) {
    %c0_i32 = arith.constant 0 : i32
    %c0_i32_0 = arith.constant 0 : i32
    %c0_i32_1 = arith.constant 0 : i32
    return %c0_i32, %c0_i32_0 : i32, i32
  }
  func.func @transform_3(%arg0: i32) -> (i32, i32, i32) {
    %c0_i32 = arith.constant 0 : i32
    %c0_i32_0 = arith.constant 0 : i32
    %c0_i32_1 = arith.constant 0 : i32
    return %arg0, %c0_i32, %c0_i32_0 : i32, i32, i32
  }
}

</mosaic_0001>

<llo_original>
// kernel: tpu_custom_call.1
$region0: #{tpu_custom_call.1}
  #allocation0 [shape = 'u32[]', space=smem, size = 0x4, offset = 0x4, fixed_abs, tag = 'smem constant byte address 0x4 - core index']
  #allocation1 [shape = 'u32[144,128]{1,0:T(1,128)}', space=vmem, size = 0x12000, scoped, tag = 'internal scratch']
  %s0 = inlined_call_operand.hbm [shape: f32[2,32,256], index: 0, kind: input, shape index: {}]
  %s1 = inlined_call_operand.vmem [shape: f32[4,32], index: 1, kind: input, shape index: {}]
  %s2 = inlined_call_operand.vmem [shape: f32[32,4], index: 2, kind: input, shape index: {}]
  %s3 = inlined_call_operand.hbm [shape: f32[2,32,256], index: 3, kind: output, shape index: {}]
  %s4 = sld [smem:[#allocation0]]
  $region26: #{tpu_custom_call.1} parent=0
    _
  %s6 = ssub.s32 1, %s4
  %s7 = scalar_select 0, %s6, %s4
  $region1: #{tpu_custom_call.1} parent=0
    #allocation2 [shape = 'u8[65536]{0}', space=vmem, size = 0x10000, scoped, tag = 'input window, operand 0, single buffered']
    #allocation3 [shape = 's32[1]{0}', space=sflag, size = 0x4, scoped, tag = 'scoped memory for tpu_custom_call.1']
    #allocation4 [shape = 's32[1]{0}', space=sflag, size = 0x4, scoped, tag = 'scoped memory for tpu_custom_call.1']
    #allocation5 [shape = 'u8[65536]{0}', space=vmem, size = 0x10000, scoped, tag = 'output window, operand 0, single buffered']
    %8 = vsyncpa [#allocation3], 0
    %9 = vsyncpa [#allocation4], 0
    // Predicated region
    $region2: #{tpu_custom_call.1} parent=1 // pred_check
      _
    $region3: #{tpu_custom_call.1} parent=1 // pred_check_branch
      %11 = sbr.rel (0) target = $region5
    $region4: #{tpu_custom_call.1} parent=1 // pred_region
      %s13 = ssub.s32 2048, 2048
      %14 = vsyncadd [#allocation3], %s13
      %s15 = sshll.u32 [#allocation2], 4
      %s16 = int_to_ptr.vmem [resolvable:$true] %s15
      %21 = dma.hbm_to_vmem [thread:$0]  %s0, 2048, %s16, [#allocation3], 256, 256, 16
    $region5: #{tpu_custom_call.1} parent=1 // pred_fallthru
      _
    // Predicated region
    $region6: #{tpu_custom_call.1} parent=1 // pred_check
      _
    $region7: #{tpu_custom_call.1} parent=1 // pred_check_branch
      %23 = sbr.rel (0) target = $region9
    $region8: #{tpu_custom_call.1} parent=1 // pred_region
      _
    $region9: #{tpu_custom_call.1} parent=1 // pred_fallthru
      _
    // Predicated region
    $region10: #{tpu_custom_call.1} parent=1 // pred_check
      _
    $region11: #{tpu_custom_call.1} parent=1 // pred_check_branch
      %25 = sbr.rel (0) target = $region13
    $region12: #{tpu_custom_call.1} parent=1 // pred_region
      _
    $region13: #{tpu_custom_call.1} parent=1 // pred_fallthru
      _
    // Predicated region
    $region14: #{tpu_custom_call.1} parent=1 // pred_check
      _
    $region15: #{tpu_custom_call.1} parent=1 // pred_check_branch
      %27 = sbr.rel (0) target = $region17
    $region16: #{tpu_custom_call.1} parent=1 // pred_region
      %28 = dma.done [#allocation3], 2048
    $region17: #{tpu_custom_call.1} parent=1 // pred_fallthru
      _
    %v29 = vld [vmem:[#allocation2] sm:$0xff]
    %v30 = vld [vmem:[#allocation2 + $0x8] sm:$0xff]
    %v31 = vld [vmem:[#allocation2 + $0x10] sm:$0xff]
    %v32 = vld [vmem:[#allocation2 + $0x18] sm:$0xff]
    %v33 = vld [vmem:[#allocation2 + $0x20] sm:$0xff]
    %v34 = vld [vmem:[#allocation2 + $0x28] sm:$0xff]
    %v35 = vld [vmem:[#allocation2 + $0x30] sm:$0xff]
    %v36 = vld [vmem:[#allocation2 + $0x38] sm:$0xff]
    %v37 = vld [vmem:[#allocation2 + $0x40] sm:$0xff]
    %v38 = vld [vmem:[#allocation2 + $0x48] sm:$0xff]
    %v39 = vld [vmem:[#allocation2 + $0x50] sm:$0xff]
    %v40 = vld [vmem:[#allocation2 + $0x58] sm:$0xff]
    %v41 = vld [vmem:[#allocation2 + $0x60] sm:$0xff]
    %v42 = vld [vmem:[#allocation2 + $0x68] sm:$0xff]
    %v43 = vld [vmem:[#allocation2 + $0x70] sm:$0xff]
    %v44 = vld [vmem:[#allocation2 + $0x78] sm:$0xff]
    %v45 = vadd.f32 %v29, %v30
    %46 = vadd.xlane.f32.xlu0 %v45
    %v47 = vpop.xlane.xlu0 %46
    %v48 = vadd.f32 %v31, %v32
    %49 = vadd.xlane.f32.xlu0 %v48
    %v50 = vpop.xlane.xlu0 %49
    %v51 = vadd.f32 %v33, %v34
    %52 = vadd.xlane.f32.xlu0 %v51
    %v53 = vpop.xlane.xlu0 %52
    %v54 = vadd.f32 %v35, %v36
    %55 = vadd.xlane.f32.xlu0 %v54
    %v56 = vpop.xlane.xlu0 %55
    %v57 = vadd.f32 %v37, %v38
    %58 = vadd.xlane.f32.xlu0 %v57
    %v59 = vpop.xlane.xlu0 %58
    %v60 = vadd.f32 %v39, %v40
    %61 = vadd.xlane.f32.xlu0 %v60
    %v62 = vpop.xlane.xlu0 %61
    %v63 = vadd.f32 %v41, %v42
    %64 = vadd.xlane.f32.xlu0 %v63
    %v65 = vpop.xlane.xlu0 %64
    %v66 = vadd.f32 %v43, %v44
    %67 = vadd.xlane.f32.xlu0 %v66
    %v68 = vpop.xlane.xlu0 %67
    %v69 = vrcp.pop 256.0
    %v70 = vmul.f32 %v47, %v69
    %v71 = vmul.f32 %v50, %v69
    %v72 = vmul.f32 %v53, %v69
    %v73 = vmul.f32 %v56, %v69
    %v74 = vmul.f32 %v59, %v69
    %v75 = vmul.f32 %v62, %v69
    %v76 = vmul.f32 %v65, %v69
    %v77 = vmul.f32 %v68, %v69
    %v78 = vld [vmem:[%s1] sm:$0xf]
    %v80 = vlaneseq
    %v81 = vshrl.u32 %v80, 7
    %v82 = vsub.s32 0, %v81
    %v83 = vrot.slane %v78, %v82
    %85 = vbcast.lane.b32.xlu0 %v83, 256
    %v86 = vpop.permute.xlu0 %85
    %s88 = sor.u32 256, 8
    %89 = vbcast.lane.b32.xlu0 %v83, %s88
    %v90 = vpop.permute.xlu0 %89
    %s92 = sor.u32 256, 16
    %93 = vbcast.lane.b32.xlu0 %v83, %s92
    %v94 = vpop.permute.xlu0 %93
    %s96 = sor.u32 256, 24
    %97 = vbcast.lane.b32.xlu0 %v83, %s96
    %v98 = vpop.permute.xlu0 %97
    %v99 = vlaneseq
    %v100 = vshrl.u32 %v99, 7
    %v101 = vsub.s32 1, %v100
    %v102 = vrot.slane %v78, %v101
    %104 = vbcast.lane.b32.xlu0 %v102, 256
    %v105 = vpop.permute.xlu0 %104
    %s107 = sor.u32 256, 8
    %108 = vbcast.lane.b32.xlu0 %v102, %s107
    %v109 = vpop.permute.xlu0 %108
    %s111 = sor.u32 256, 16
    %112 = vbcast.lane.b32.xlu0 %v102, %s111
    %v113 = vpop.permute.xlu0 %112
    %s115 = sor.u32 256, 24
    %116 = vbcast.lane.b32.xlu0 %v102, %s115
    %v117 = vpop.permute.xlu0 %116
    %v118 = vlaneseq
    %v119 = vshrl.u32 %v118, 7
    %v120 = vsub.s32 2, %v119
    %v121 = vrot.slane %v78, %v120
    %123 = vbcast.lane.b32.xlu0 %v121, 256
    %v124 = vpop.permute.xlu0 %123
    %s126 = sor.u32 256, 8
    %127 = vbcast.lane.b32.xlu0 %v121, %s126
    %v128 = vpop.permute.xlu0 %127
    %s130 = sor.u32 256, 16
    %131 = vbcast.lane.b32.xlu0 %v121, %s130
    %v132 = vpop.permute.xlu0 %131
    %s134 = sor.u32 256, 24
    %135 = vbcast.lane.b32.xlu0 %v121, %s134
    %v136 = vpop.permute.xlu0 %135
    %v137 = vlaneseq
    %v138 = vshrl.u32 %v137, 7
    %v139 = vsub.s32 3, %v138
    %v140 = vrot.slane %v78, %v139
    %142 = vbcast.lane.b32.xlu0 %v140, 256
    %v143 = vpop.permute.xlu0 %142
    %s145 = sor.u32 256, 8
    %146 = vbcast.lane.b32.xlu0 %v140, %s145
    %v147 = vpop.permute.xlu0 %146
    %s149 = sor.u32 256, 16
    %150 = vbcast.lane.b32.xlu0 %v140, %s149
    %v151 = vpop.permute.xlu0 %150
    %s153 = sor.u32 256, 24
    %154 = vbcast.lane.b32.xlu0 %v140, %s153
    %v155 = vpop.permute.xlu0 %154
    %v172 = vmul.f32 %v70, %v86
    %v173 = vmul.f32 %v71, %v90
    %v174 = vmul.f32 %v72, %v94
    %v175 = vmul.f32 %v73, %v98
    %v176 = vmul.f32 %v70, %v105
    %v177 = vmul.f32 %v71, %v109
    %v178 = vmul.f32 %v72, %v113
    %v179 = vmul.f32 %v73, %v117
    %v180 = vmul.f32 %v70, %v124
    %v181 = vmul.f32 %v71, %v128
    %v182 = vmul.f32 %v72, %v132
    %v183 = vmul.f32 %v73, %v136
    %v184 = vmul.f32 %v70, %v143
    %v185 = vmul.f32 %v71, %v147
    %v186 = vmul.f32 %v72, %v151
    %v187 = vmul.f32 %v73, %v155
    %v188 = vmul.f32 %v74, %v86
    %v189 = vmul.f32 %v75, %v90
    %v190 = vmul.f32 %v76, %v94
    %v191 = vmul.f32 %v77, %v98
    %v192 = vmul.f32 %v74, %v105
    %v193 = vmul.f32 %v75, %v109
    %v194 = vmul.f32 %v76, %v113
    %v195 = vmul.f32 %v77, %v117
    %v196 = vmul.f32 %v74, %v124
    %v197 = vmul.f32 %v75, %v128
    %v198 = vmul.f32 %v76, %v132
    %v199 = vmul.f32 %v77, %v136
    %v200 = vmul.f32 %v74, %v143
    %v201 = vmul.f32 %v75, %v147
    %v202 = vmul.f32 %v76, %v151
    %v203 = vmul.f32 %v77, %v155
    %236 = vset.pattern.permute.xlu0 0
    %237 = vperm.xlu0 %236, %v172
    %v238 = vpop.permute.xlu0 %237
    %239 = vset.pattern.permute.xlu0 0
    %240 = vperm.xlu0 %239, %v173
    %v241 = vpop.permute.xlu0 %240
    %242 = vset.pattern.permute.xlu0 0
    %243 = vperm.xlu0 %242, %v174
    %v244 = vpop.permute.xlu0 %243
    %245 = vset.pattern.permute.xlu0 0
    %246 = vperm.xlu0 %245, %v175
    %v247 = vpop.permute.xlu0 %246
    %248 = vset.pattern.permute.xlu0 0
    %249 = vperm.xlu0 %248, %v176
    %v250 = vpop.permute.xlu0 %249
    %251 = vset.pattern.permute.xlu0 0
    %252 = vperm.xlu0 %251, %v177
    %v253 = vpop.permute.xlu0 %252
    %254 = vset.pattern.permute.xlu0 0
    %255 = vperm.xlu0 %254, %v178
    %v256 = vpop.permute.xlu0 %255
    %257 = vset.pattern.permute.xlu0 0
    %258 = vperm.xlu0 %257, %v179
    %v259 = vpop.permute.xlu0 %258
    %260 = vset.pattern.permute.xlu0 0
    %261 = vperm.xlu0 %260, %v180
    %v262 = vpop.permute.xlu0 %261
    %263 = vset.pattern.permute.xlu0 0
    %264 = vperm.xlu0 %263, %v181
    %v265 = vpop.permute.xlu0 %264
    %266 = vset.pattern.permute.xlu0 0
    %267 = vperm.xlu0 %266, %v182
    %v268 = vpop.permute.xlu0 %267
    %269 = vset.pattern.permute.xlu0 0
    %270 = vperm.xlu0 %269, %v183
    %v271 = vpop.permute.xlu0 %270
    %272 = vset.pattern.permute.xlu0 0
    %273 = vperm.xlu0 %272, %v184
    %v274 = vpop.permute.xlu0 %273
    %275 = vset.pattern.permute.xlu0 0
    %276 = vperm.xlu0 %275, %v185
    %v277 = vpop.permute.xlu0 %276
    %278 = vset.pattern.permute.xlu0 0
    %279 = vperm.xlu0 %278, %v186
    %v280 = vpop.permute.xlu0 %279
    %281 = vset.pattern.permute.xlu0 0
    %282 = vperm.xlu0 %281, %v187
    %v283 = vpop.permute.xlu0 %282
    %284 = vset.pattern.permute.xlu0 0
    %285 = vperm.xlu0 %284, %v188
    %v286 = vpop.permute.xlu0 %285
    %287 = vset.pattern.permute.xlu0 0
    %288 = vperm.xlu0 %287, %v189
    %v289 = vpop.permute.xlu0 %288
    %290 = vset.pattern.permute.xlu0 0
    %291 = vperm.xlu0 %290, %v190
    %v292 = vpop.permute.xlu0 %291
    %293 = vset.pattern.permute.xlu0 0
    %294 = vperm.xlu0 %293, %v191
    %v295 = vpop.permute.xlu0 %294
    %296 = vset.pattern.permute.xlu0 0
    %297 = vperm.xlu0 %296, %v192
    %v298 = vpop.permute.xlu0 %297
    %299 = vset.pattern.permute.xlu0 0
    %300 = vperm.xlu0 %299, %v193
    %v301 = vpop.permute.xlu0 %300
    %302 = vset.pattern.permute.xlu0 0
    %303 = vperm.xlu0 %302, %v194
    %v304 = vpop.permute.xlu0 %303
    %305 = vset.pattern.permute.xlu0 0
    %306 = vperm.xlu0 %305, %v195
    %v307 = vpop.permute.xlu0 %306
    %308 = vset.pattern.permute.xlu0 0
    %309 = vperm.xlu0 %308, %v196
    %v310 = vpop.permute.xlu0 %309
    %311 = vset.pattern.permute.xlu0 0
    %312 = vperm.xlu0 %311, %v197
    %v313 = vpop.permute.xlu0 %312
    %314 = vset.pattern.permute.xlu0 0
    %315 = vperm.xlu0 %314, %v198
    %v316 = vpop.permute.xlu0 %315
    %317 = vset.pattern.permute.xlu0 0
    %318 = vperm.xlu0 %317, %v199
    %v319 = vpop.permute.xlu0 %318
    %320 = vset.pattern.permute.xlu0 0
    %321 = vperm.xlu0 %320, %v200
    %v322 = vpop.permute.xlu0 %321
    %323 = vset.pattern.permute.xlu0 0
    %324 = vperm.xlu0 %323, %v201
    %v325 = vpop.permute.xlu0 %324
    %326 = vset.pattern.permute.xlu0 0
    %327 = vperm.xlu0 %326, %v202
    %v328 = vpop.permute.xlu0 %327
    %329 = vset.pattern.permute.xlu0 0
    %330 = vperm.xlu0 %329, %v203
    %v331 = vpop.permute.xlu0 %330
    %v332 = vlaneseq
    %v333 = vand.u32 %v332, 127
    %v334 = vlaneseq
    %v335 = vshrl.u32 %v334, 7
    %v336 = vsub.s32 %v333, %v335
    %v337 = vrot.slane %v238, %v336
    %v338 = vadd.s32 %v333, 4294967288
    %v339 = vlaneseq
    %v340 = vshrl.u32 %v339, 7
    %v341 = vsub.s32 %v338, %v340
    %v342 = vrot.slane %v241, %v341
    %vm343 = vcmask 130112
    %v344 = vsel %vm343, %v342, %v337
    %v345 = vadd.s32 %v333, 4294967280
    %v346 = vlaneseq
    %v347 = vshrl.u32 %v346, 7
    %v348 = vsub.s32 %v345, %v347
    %v349 = vrot.slane %v244, %v348
    %vm350 = vcmask 195712
    %v351 = vsel %vm350, %v349, %v344
    %v352 = vadd.s32 %v333, 4294967272
    %v353 = vlaneseq
    %v354 = vshrl.u32 %v353, 7
    %v355 = vsub.s32 %v352, %v354
    %v356 = vrot.slane %v247, %v355
    %vm357 = vcmask 261312
    %v358 = vsel %vm357, %v356, %v351
    %v359 = vlaneseq
    %v360 = vshrl.u32 %v359, 7
    %v361 = vsub.s32 %v333, %v360
    %v362 = vrot.slane %v250, %v361
    %v363 = vlaneseq
    %v364 = vshrl.u32 %v363, 7
    %v365 = vsub.s32 %v338, %v364
    %v366 = vrot.slane %v253, %v365
    %v367 = vsel %vm343, %v366, %v362
    %v368 = vlaneseq
    %v369 = vshrl.u32 %v368, 7
    %v370 = vsub.s32 %v345, %v369
    %v371 = vrot.slane %v256, %v370
    %v372 = vsel %vm350, %v371, %v367
    %v373 = vlaneseq
    %v374 = vshrl.u32 %v373, 7
    %v375 = vsub.s32 %v352, %v374
    %v376 = vrot.slane %v259, %v375
    %v377 = vsel %vm357, %v376, %v372
    %v378 = vlaneseq
    %v379 = vshrl.u32 %v378, 7
    %v380 = vsub.s32 %v333, %v379
    %v381 = vrot.slane %v262, %v380
    %v382 = vlaneseq
    %v383 = vshrl.u32 %v382, 7
    %v384 = vsub.s32 %v338, %v383
    %v385 = vrot.slane %v265, %v384
    %v386 = vsel %vm343, %v385, %v381
    %v387 = vlaneseq
    %v388 = vshrl.u32 %v387, 7
    %v389 = vsub.s32 %v345, %v388
    %v390 = vrot.slane %v268, %v389
    %v391 = vsel %vm350, %v390, %v386
    %v392 = vlaneseq
    %v393 = vshrl.u32 %v392, 7
    %v394 = vsub.s32 %v352, %v393
    %v395 = vrot.slane %v271, %v394
    %v396 = vsel %vm357, %v395, %v391
    %v397 = vlaneseq
    %v398 = vshrl.u32 %v397, 7
    %v399 = vsub.s32 %v333, %v398
    %v400 = vrot.slane %v274, %v399
    %v401 = vlaneseq
    %v402 = vshrl.u32 %v401, 7
    %v403 = vsub.s32 %v338, %v402
    %v404 = vrot.slane %v277, %v403
    %v405 = vsel %vm343, %v404, %v400
    %v406 = vlaneseq
    %v407 = vshrl.u32 %v406, 7
    %v408 = vsub.s32 %v345, %v407
    %v409 = vrot.slane %v280, %v408
    %v410 = vsel %vm350, %v409, %v405
    %v411 = vlaneseq
    %v412 = vshrl.u32 %v411, 7
    %v413 = vsub.s32 %v352, %v412
    %v414 = vrot.slane %v283, %v413
    %v415 = vsel %vm357, %v414, %v410
    %v416 = vlaneseq
    %v417 = vshrl.u32 %v416, 7
    %v418 = vsub.s32 %v333, %v417
    %v419 = vrot.slane %v286, %v418
    %v420 = vlaneseq
    %v421 = vshrl.u32 %v420, 7
    %v422 = vsub.s32 %v338, %v421
    %v423 = vrot.slane %v289, %v422
    %v424 = vsel %vm343, %v423, %v419
    %v425 = vlaneseq
    %v426 = vshrl.u32 %v425, 7
    %v427 = vsub.s32 %v345, %v426
    %v428 = vrot.slane %v292, %v427
    %v429 = vsel %vm350, %v428, %v424
    %v430 = vlaneseq
    %v431 = vshrl.u32 %v430, 7
    %v432 = vsub.s32 %v352, %v431
    %v433 = vrot.slane %v295, %v432
    %v434 = vsel %vm357, %v433, %v429
    %v435 = vlaneseq
    %v436 = vshrl.u32 %v435, 7
    %v437 = vsub.s32 %v333, %v436
    %v438 = vrot.slane %v298, %v437
    %v439 = vlaneseq
    %v440 = vshrl.u32 %v439, 7
    %v441 = vsub.s32 %v338, %v440
    %v442 = vrot.slane %v301, %v441
    %v443 = vsel %vm343, %v442, %v438
    %v444 = vlaneseq
    %v445 = vshrl.u32 %v444, 7
    %v446 = vsub.s32 %v345, %v445
    %v447 = vrot.slane %v304, %v446
    %v448 = vsel %vm350, %v447, %v443
    %v449 = vlaneseq
    %v450 = vshrl.u32 %v449, 7
    %v451 = vsub.s32 %v352, %v450
    %v452 = vrot.slane %v307, %v451
    %v453 = vsel %vm357, %v452, %v448
    %v454 = vlaneseq
    %v455 = vshrl.u32 %v454, 7
    %v456 = vsub.s32 %v333, %v455
    %v457 = vrot.slane %v310, %v456
    %v458 = vlaneseq
    %v459 = vshrl.u32 %v458, 7
    %v460 = vsub.s32 %v338, %v459
    %v461 = vrot.slane %v313, %v460
    %v462 = vsel %vm343, %v461, %v457
    %v463 = vlaneseq
    %v464 = vshrl.u32 %v463, 7
    %v465 = vsub.s32 %v345, %v464
    %v466 = vrot.slane %v316, %v465
    %v467 = vsel %vm350, %v466, %v462
    %v468 = vlaneseq
    %v469 = vshrl.u32 %v468, 7
    %v470 = vsub.s32 %v352, %v469
    %v471 = vrot.slane %v319, %v470
    %v472 = vsel %vm357, %v471, %v467
    %v473 = vlaneseq
    %v474 = vshrl.u32 %v473, 7
    %v475 = vsub.s32 %v333, %v474
    %v476 = vrot.slane %v322, %v475
    %v477 = vlaneseq
    %v478 = vshrl.u32 %v477, 7
    %v479 = vsub.s32 %v338, %v478
    %v480 = vrot.slane %v325, %v479
    %v481 = vsel %vm343, %v480, %v476
    %v482 = vlaneseq
    %v483 = vshrl.u32 %v482, 7
    %v484 = vsub.s32 %v345, %v483
    %v485 = vrot.slane %v328, %v484
    %v486 = vsel %vm350, %v485, %v481
    %v487 = vlaneseq
    %v488 = vshrl.u32 %v487, 7
    %v489 = vsub.s32 %v352, %v488
    %v490 = vrot.slane %v331, %v489
    %v491 = vsel %vm357, %v490, %v486
    %vm492 = vcmask 1041409
    %v493 = vsel %vm492, %v377, %v358
    %vm494 = vcmask 1042434
    %v495 = vsel %vm494, %v396, %v493
    %vm496 = vcmask 1043459
    %v497 = vsel %vm496, %v415, %v495
    %v498 = vsel %vm492, %v453, %v434
    %v499 = vsel %vm494, %v472, %v498
    %v500 = vsel %vm496, %v491, %v499
    %vm503 = vcmask 257024
    %v504 = vsel %vm503, %v497, 0.0
    %505 = vadd.xlane.f32.xlu0 %v504
    %v506 = vpop.xlane.xlu0 %505
    %v507 = vsel %vm503, %v500, 0.0
    %508 = vadd.xlane.f32.xlu0 %v507
    %v509 = vpop.xlane.xlu0 %508
    %v510 = vmax.f32 %v506, 0.0
    %v511 = vmax.f32 %v509, 0.0
    %v512 = vld [vmem:[%s2] sm:$0xff]
    %v513 = vld [vmem:[%s2 + $0x8] sm:$0xff]
    %v514 = vld [vmem:[%s2 + $0x10] sm:$0xff]
    %v515 = vld [vmem:[%s2 + $0x18] sm:$0xff]
    %v520 = vlaneseq
    %v521 = vshrl.u32 %v520, 7
    %v522 = vsub.s32 0, %v521
    %v523 = vrot.slane %v512, %v522
    %525 = vbcast.lane.b32.xlu0 %v523, 256
    %v526 = vpop.permute.xlu0 %525
    %v527 = vlaneseq
    %v528 = vshrl.u32 %v527, 7
    %v529 = vsub.s32 1, %v528
    %v530 = vrot.slane %v512, %v529
    %532 = vbcast.lane.b32.xlu0 %v530, 256
    %v533 = vpop.permute.xlu0 %532
    %v534 = vlaneseq
    %v535 = vshrl.u32 %v534, 7
    %v536 = vsub.s32 2, %v535
    %v537 = vrot.slane %v512, %v536
    %539 = vbcast.lane.b32.xlu0 %v537, 256
    %v540 = vpop.permute.xlu0 %539
    %v541 = vlaneseq
    %v542 = vshrl.u32 %v541, 7
    %v543 = vsub.s32 3, %v542
    %v544 = vrot.slane %v512, %v543
    %546 = vbcast.lane.b32.xlu0 %v544, 256
    %v547 = vpop.permute.xlu0 %546
    %v548 = vlaneseq
    %v549 = vshrl.u32 %v548, 7
    %v550 = vsub.s32 4, %v549
    %v551 = vrot.slane %v512, %v550
    %553 = vbcast.lane.b32.xlu0 %v551, 256
    %v554 = vpop.permute.xlu0 %553
    %v555 = vlaneseq
    %v556 = vshrl.u32 %v555, 7
    %v557 = vsub.s32 5, %v556
    %v558 = vrot.slane %v512, %v557
    %560 = vbcast.lane.b32.xlu0 %v558, 256
    %v561 = vpop.permute.xlu0 %560
    %v562 = vlaneseq
    %v563 = vshrl.u32 %v562, 7
    %v564 = vsub.s32 6, %v563
    %v565 = vrot.slane %v512, %v564
    %567 = vbcast.lane.b32.xlu0 %v565, 256
    %v568 = vpop.permute.xlu0 %567
    %v569 = vlaneseq
    %v570 = vshrl.u32 %v569, 7
    %v571 = vsub.s32 7, %v570
    %v572 = vrot.slane %v512, %v571
    %574 = vbcast.lane.b32.xlu0 %v572, 256
    %v575 = vpop.permute.xlu0 %574
    %v576 = vlaneseq
    %v577 = vshrl.u32 %v576, 7
    %v578 = vsub.s32 0, %v577
    %v579 = vrot.slane %v513, %v578
    %581 = vbcast.lane.b32.xlu0 %v579, 256
    %v582 = vpop.permute.xlu0 %581
    %v583 = vlaneseq
    %v584 = vshrl.u32 %v583, 7
    %v585 = vsub.s32 1, %v584
    %v586 = vrot.slane %v513, %v585
    %588 = vbcast.lane.b32.xlu0 %v586, 256
    %v589 = vpop.permute.xlu0 %588
    %v590 = vlaneseq
    %v591 = vshrl.u32 %v590, 7
    %v592 = vsub.s32 2, %v591
    %v593 = vrot.slane %v513, %v592
    %595 = vbcast.lane.b32.xlu0 %v593, 256
    %v596 = vpop.permute.xlu0 %595
    %v597 = vlaneseq
    %v598 = vshrl.u32 %v597, 7
    %v599 = vsub.s32 3, %v598
    %v600 = vrot.slane %v513, %v599
    %602 = vbcast.lane.b32.xlu0 %v600, 256
    %v603 = vpop.permute.xlu0 %602
    %v604 = vlaneseq
    %v605 = vshrl.u32 %v604, 7
    %v606 = vsub.s32 4, %v605
    %v607 = vrot.slane %v513, %v606
    %609 = vbcast.lane.b32.xlu0 %v607, 256
    %v610 = vpop.permute.xlu0 %609
    %v611 = vlaneseq
    %v612 = vshrl.u32 %v611, 7
    %v613 = vsub.s32 5, %v612
    %v614 = vrot.slane %v513, %v613
    %616 = vbcast.lane.b32.xlu0 %v614, 256
    %v617 = vpop.permute.xlu0 %616
    %v618 = vlaneseq
    %v619 = vshrl.u32 %v618, 7
    %v620 = vsub.s32 6, %v619
    %v621 = vrot.slane %v513, %v620
    %623 = vbcast.lane.b32.xlu0 %v621, 256
    %v624 = vpop.permute.xlu0 %623
    %v625 = vlaneseq
    %v626 = vshrl.u32 %v625, 7
    %v627 = vsub.s32 7, %v626
    %v628 = vrot.slane %v513, %v627
    %630 = vbcast.lane.b32.xlu0 %v628, 256
    %v631 = vpop.permute.xlu0 %630
    %v632 = vlaneseq
    %v633 = vshrl.u32 %v632, 7
    %v634 = vsub.s32 0, %v633
    %v635 = vrot.slane %v514, %v634
    %637 = vbcast.lane.b32.xlu0 %v635, 256
    %v638 = vpop.permute.xlu0 %637
    %v639 = vlaneseq
    %v640 = vshrl.u32 %v639, 7
    %v641 = vsub.s32 1, %v640
    %v642 = vrot.slane %v514, %v641
    %644 = vbcast.lane.b32.xlu0 %v642, 256
    %v645 = vpop.permute.xlu0 %644
    %v646 = vlaneseq
    %v647 = vshrl.u32 %v646, 7
    %v648 = vsub.s32 2, %v647
    %v649 = vrot.slane %v514, %v648
    %651 = vbcast.lane.b32.xlu0 %v649, 256
    %v652 = vpop.permute.xlu0 %651
    %v653 = vlaneseq
    %v654 = vshrl.u32 %v653, 7
    %v655 = vsub.s32 3, %v654
    %v656 = vrot.slane %v514, %v655
    %658 = vbcast.lane.b32.xlu0 %v656, 256
    %v659 = vpop.permute.xlu0 %658
    %v660 = vlaneseq
    %v661 = vshrl.u32 %v660, 7
    %v662 = vsub.s32 4, %v661
    %v663 = vrot.slane %v514, %v662
    %665 = vbcast.lane.b32.xlu0 %v663, 256
    %v666 = vpop.permute.xlu0 %665
    %v667 = vlaneseq
    %v668 = vshrl.u32 %v667, 7
    %v669 = vsub.s32 5, %v668
    %v670 = vrot.slane %v514, %v669
    %672 = vbcast.lane.b32.xlu0 %v670, 256
    %v673 = vpop.permute.xlu0 %672
    %v674 = vlaneseq
    %v675 = vshrl.u32 %v674, 7
    %v676 = vsub.s32 6, %v675
    %v677 = vrot.slane %v514, %v676
    %679 = vbcast.lane.b32.xlu0 %v677, 256
    %v680 = vpop.permute.xlu0 %679
    %v681 = vlaneseq
    %v682 = vshrl.u32 %v681, 7
    %v683 = vsub.s32 7, %v682
    %v684 = vrot.slane %v514, %v683
    %686 = vbcast.lane.b32.xlu0 %v684, 256
    %v687 = vpop.permute.xlu0 %686
    %v688 = vlaneseq
    %v689 = vshrl.u32 %v688, 7
    %v690 = vsub.s32 0, %v689
    %v691 = vrot.slane %v515, %v690
    %693 = vbcast.lane.b32.xlu0 %v691, 256
    %v694 = vpop.permute.xlu0 %693
    %v695 = vlaneseq
    %v696 = vshrl.u32 %v695, 7
    %v697 = vsub.s32 1, %v696
    %v698 = vrot.slane %v515, %v697
    %700 = vbcast.lane.b32.xlu0 %v698, 256
    %v701 = vpop.permute.xlu0 %700
    %v702 = vlaneseq
    %v703 = vshrl.u32 %v702, 7
    %v704 = vsub.s32 2, %v703
    %v705 = vrot.slane %v515, %v704
    %707 = vbcast.lane.b32.xlu0 %v705, 256
    %v708 = vpop.permute.xlu0 %707
    %v709 = vlaneseq
    %v710 = vshrl.u32 %v709, 7
    %v711 = vsub.s32 3, %v710
    %v712 = vrot.slane %v515, %v711
    %714 = vbcast.lane.b32.xlu0 %v712, 256
    %v715 = vpop.permute.xlu0 %714
    %v716 = vlaneseq
    %v717 = vshrl.u32 %v716, 7
    %v718 = vsub.s32 4, %v717
    %v719 = vrot.slane %v515, %v718
    %721 = vbcast.lane.b32.xlu0 %v719, 256
    %v722 = vpop.permute.xlu0 %721
    %v723 = vlaneseq
    %v724 = vshrl.u32 %v723, 7
    %v725 = vsub.s32 5, %v724
    %v726 = vrot.slane %v515, %v725
    %728 = vbcast.lane.b32.xlu0 %v726, 256
    %v729 = vpop.permute.xlu0 %728
    %v730 = vlaneseq
    %v731 = vshrl.u32 %v730, 7
    %v732 = vsub.s32 6, %v731
    %v733 = vrot.slane %v515, %v732
    %735 = vbcast.lane.b32.xlu0 %v733, 256
    %v736 = vpop.permute.xlu0 %735
    %v737 = vlaneseq
    %v738 = vshrl.u32 %v737, 7
    %v739 = vsub.s32 7, %v738
    %v740 = vrot.slane %v515, %v739
    %742 = vbcast.lane.b32.xlu0 %v740, 256
    %v743 = vpop.permute.xlu0 %742
    %v776 = vmul.f32 %v510, %v526
    %v777 = vmul.f32 %v510, %v533
    %v778 = vmul.f32 %v510, %v540
    %v779 = vmul.f32 %v510, %v547
    %v780 = vmul.f32 %v510, %v554
    %v781 = vmul.f32 %v510, %v561
    %v782 = vmul.f32 %v510, %v568
    %v783 = vmul.f32 %v510, %v575
    %v784 = vmul.f32 %v510, %v582
    %v785 = vmul.f32 %v510, %v589
    %v786 = vmul.f32 %v510, %v596
    %v787 = vmul.f32 %v510, %v603
    %v788 = vmul.f32 %v510, %v610
    %v789 = vmul.f32 %v510, %v617
    %v790 = vmul.f32 %v510, %v624
    %v791 = vmul.f32 %v510, %v631
    %v792 = vmul.f32 %v510, %v638
    %v793 = vmul.f32 %v510, %v645
    %v794 = vmul.f32 %v510, %v652
    %v795 = vmul.f32 %v510, %v659
    %v796 = vmul.f32 %v510, %v666
    %v797 = vmul.f32 %v510, %v673
    %v798 = vmul.f32 %v510, %v680
    %v799 = vmul.f32 %v510, %v687
    %v800 = vmul.f32 %v510, %v694
    %v801 = vmul.f32 %v510, %v701
    %v802 = vmul.f32 %v510, %v708
    %v803 = vmul.f32 %v510, %v715
    %v804 = vmul.f32 %v510, %v722
    %v805 = vmul.f32 %v510, %v729
    %v806 = vmul.f32 %v510, %v736
    %v807 = vmul.f32 %v510, %v743
    %v808 = vmul.f32 %v511, %v526
    %v809 = vmul.f32 %v511, %v533
    %v810 = vmul.f32 %v511, %v540
    %v811 = vmul.f32 %v511, %v547
    %v812 = vmul.f32 %v511, %v554
    %v813 = vmul.f32 %v511, %v561
    %v814 = vmul.f32 %v511, %v568
    %v815 = vmul.f32 %v511, %v575
    %v816 = vmul.f32 %v511, %v582
    %v817 = vmul.f32 %v511, %v589
    %v818 = vmul.f32 %v511, %v596
    %v819 = vmul.f32 %v511, %v603
    %v820 = vmul.f32 %v511, %v610
    %v821 = vmul.f32 %v511, %v617
    %v822 = vmul.f32 %v511, %v624
    %v823 = vmul.f32 %v511, %v631
    %v824 = vmul.f32 %v511, %v638
    %v825 = vmul.f32 %v511, %v645
    %v826 = vmul.f32 %v511, %v652
    %v827 = vmul.f32 %v511, %v659
    %v828 = vmul.f32 %v511, %v666
    %v829 = vmul.f32 %v511, %v673
    %v830 = vmul.f32 %v511, %v680
    %v831 = vmul.f32 %v511, %v687
    %v832 = vmul.f32 %v511, %v694
    %v833 = vmul.f32 %v511, %v701
    %v834 = vmul.f32 %v511, %v708
    %v835 = vmul.f32 %v511, %v715
    %v836 = vmul.f32 %v511, %v722
    %v837 = vmul.f32 %v511, %v729
    %v838 = vmul.f32 %v511, %v736
    %v839 = vmul.f32 %v511, %v743
    %904 = vset.pattern.permute.xlu0 0
    %905 = vperm.xlu0 %904, %v776
    %v906 = vpop.permute.xlu0 %905
    %907 = vset.pattern.permute.xlu0 0
    %908 = vperm.xlu0 %907, %v777
    %v909 = vpop.permute.xlu0 %908
    %910 = vset.pattern.permute.xlu0 0
    %911 = vperm.xlu0 %910, %v778
    %v912 = vpop.permute.xlu0 %911
    %913 = vset.pattern.permute.xlu0 0
    %914 = vperm.xlu0 %913, %v779
    %v915 = vpop.permute.xlu0 %914
    %916 = vset.pattern.permute.xlu0 0
    %917 = vperm.xlu0 %916, %v780
    %v918 = vpop.permute.xlu0 %917
    %919 = vset.pattern.permute.xlu0 0
    %920 = vperm.xlu0 %919, %v781
    %v921 = vpop.permute.xlu0 %920
    %922 = vset.pattern.permute.xlu0 0
    %923 = vperm.xlu0 %922, %v782
    %v924 = vpop.permute.xlu0 %923
    %925 = vset.pattern.permute.xlu0 0
    %926 = vperm.xlu0 %925, %v783
    %v927 = vpop.permute.xlu0 %926
    %928 = vset.pattern.permute.xlu0 0
    %929 = vperm.xlu0 %928, %v784
    %v930 = vpop.permute.xlu0 %929
    %931 = vset.pattern.permute.xlu0 0
    %932 = vperm.xlu0 %931, %v785
    %v933 = vpop.permute.xlu0 %932
    %934 = vset.pattern.permute.xlu0 0
    %935 = vperm.xlu0 %934, %v786
    %v936 = vpop.permute.xlu0 %935
    %937 = vset.pattern.permute.xlu0 0
    %938 = vperm.xlu0 %937, %v787
    %v939 = vpop.permute.xlu0 %938
    %940 = vset.pattern.permute.xlu0 0
    %941 = vperm.xlu0 %940, %v788
    %v942 = vpop.permute.xlu0 %941
    %943 = vset.pattern.permute.xlu0 0
    %944 = vperm.xlu0 %943, %v789
    %v945 = vpop.permute.xlu0 %944
    %946 = vset.pattern.permute.xlu0 0
    %947 = vperm.xlu0 %946, %v790
    %v948 = vpop.permute.xlu0 %947
    %949 = vset.pattern.permute.xlu0 0
    %950 = vperm.xlu0 %949, %v791
    %v951 = vpop.permute.xlu0 %950
    %952 = vset.pattern.permute.xlu0 0
    %953 = vperm.xlu0 %952, %v792
    %v954 = vpop.permute.xlu0 %953
    %955 = vset.pattern.permute.xlu0 0
    %956 = vperm.xlu0 %955, %v793
    %v957 = vpop.permute.xlu0 %956
    %958 = vset.pattern.permute.xlu0 0
    %959 = vperm.xlu0 %958, %v794
    %v960 = vpop.permute.xlu0 %959
    %961 = vset.pattern.permute.xlu0 0
    %962 = vperm.xlu0 %961, %v795
    %v963 = vpop.permute.xlu0 %962
    %964 = vset.pattern.permute.xlu0 0
    %965 = vperm.xlu0 %964, %v796
    %v966 = vpop.permute.xlu0 %965
    %967 = vset.pattern.permute.xlu0 0
    %968 = vperm.xlu0 %967, %v797
    %v969 = vpop.permute.xlu0 %968
    %970 = vset.pattern.permute.xlu0 0
    %971 = vperm.xlu0 %970, %v798
    %v972 = vpop.permute.xlu0 %971
    %973 = vset.pattern.permute.xlu0 0
    %974 = vperm.xlu0 %973, %v799
    %v975 = vpop.permute.xlu0 %974
    %976 = vset.pattern.permute.xlu0 0
    %977 = vperm.xlu0 %976, %v800
    %v978 = vpop.permute.xlu0 %977
    %979 = vset.pattern.permute.xlu0 0
    %980 = vperm.xlu0 %979, %v801
    %v981 = vpop.permute.xlu0 %980
    %982 = vset.pattern.permute.xlu0 0
    %983 = vperm.xlu0 %982, %v802
    %v984 = vpop.permute.xlu0 %983
    %985 = vset.pattern.permute.xlu0 0
    %986 = vperm.xlu0 %985, %v803
    %v987 = vpop.permute.xlu0 %986
    %988 = vset.pattern.permute.xlu0 0
    %989 = vperm.xlu0 %988, %v804
    %v990 = vpop.permute.xlu0 %989
    %991 = vset.pattern.permute.xlu0 0
    %992 = vperm.xlu0 %991, %v805
    %v993 = vpop.permute.xlu0 %992
    %994 = vset.pattern.permute.xlu0 0
    %995 = vperm.xlu0 %994, %v806
    %v996 = vpop.permute.xlu0 %995
    %997 = vset.pattern.permute.xlu0 0
    %998 = vperm.xlu0 %997, %v807
    %v999 = vpop.permute.xlu0 %998
    %1000 = vset.pattern.permute.xlu0 0
    %1001 = vperm.xlu0 %1000, %v808
    %v1002 = vpop.permute.xlu0 %1001
    %1003 = vset.pattern.permute.xlu0 0
    %1004 = vperm.xlu0 %1003, %v809
    %v1005 = vpop.permute.xlu0 %1004
    %1006 = vset.pattern.permute.xlu0 0
    %1007 = vperm.xlu0 %1006, %v810
    %v1008 = vpop.permute.xlu0 %1007
    %1009 = vset.pattern.permute.xlu0 0
    %1010 = vperm.xlu0 %1009, %v811
    %v1011 = vpop.permute.xlu0 %1010
    %1012 = vset.pattern.permute.xlu0 0
    %1013 = vperm.xlu0 %1012, %v812
    %v1014 = vpop.permute.xlu0 %1013
    %1015 = vset.pattern.permute.xlu0 0
    %1016 = vperm.xlu0 %1015, %v813
    %v1017 = vpop.permute.xlu0 %1016
    %1018 = vset.pattern.permute.xlu0 0
    %1019 = vperm.xlu0 %1018, %v814
    %v1020 = vpop.permute.xlu0 %1019
    %1021 = vset.pattern.permute.xlu0 0
    %1022 = vperm.xlu0 %1021, %v815
    %v1023 = vpop.permute.xlu0 %1022
    %1024 = vset.pattern.permute.xlu0 0
    %1025 = vperm.xlu0 %1024, %v816
    %v1026 = vpop.permute.xlu0 %1025
    %1027 = vset.pattern.permute.xlu0 0
    %1028 = vperm.xlu0 %1027, %v817
    %v1029 = vpop.permute.xlu0 %1028
    %1030 = vset.pattern.permute.xlu0 0
    %1031 = vperm.xlu0 %1030, %v818
    %v1032 = vpop.permute.xlu0 %1031
    %1033 = vset.pattern.permute.xlu0 0
    %1034 = vperm.xlu0 %1033, %v819
    %v1035 = vpop.permute.xlu0 %1034
    %1036 = vset.pattern.permute.xlu0 0
    %1037 = vperm.xlu0 %1036, %v820
    %v1038 = vpop.permute.xlu0 %1037
    %1039 = vset.pattern.permute.xlu0 0
    %1040 = vperm.xlu0 %1039, %v821
    %v1041 = vpop.permute.xlu0 %1040
    %1042 = vset.pattern.permute.xlu0 0
    %1043 = vperm.xlu0 %1042, %v822
    %v1044 = vpop.permute.xlu0 %1043
    %1045 = vset.pattern.permute.xlu0 0
    %1046 = vperm.xlu0 %1045, %v823
    %v1047 = vpop.permute.xlu0 %1046
    %1048 = vset.pattern.permute.xlu0 0
    %1049 = vperm.xlu0 %1048, %v824
    %v1050 = vpop.permute.xlu0 %1049
    %1051 = vset.pattern.permute.xlu0 0
    %1052 = vperm.xlu0 %1051, %v825
    %v1053 = vpop.permute.xlu0 %1052
    %1054 = vset.pattern.permute.xlu0 0
    %1055 = vperm.xlu0 %1054, %v826
    %v1056 = vpop.permute.xlu0 %1055
    %1057 = vset.pattern.permute.xlu0 0
    %1058 = vperm.xlu0 %1057, %v827
    %v1059 = vpop.permute.xlu0 %1058
    %1060 = vset.pattern.permute.xlu0 0
    %1061 = vperm.xlu0 %1060, %v828
    %v1062 = vpop.permute.xlu0 %1061
    %1063 = vset.pattern.permute.xlu0 0
    %1064 = vperm.xlu0 %1063, %v829
    %v1065 = vpop.permute.xlu0 %1064
    %1066 = vset.pattern.permute.xlu0 0
    %1067 = vperm.xlu0 %1066, %v830
    %v1068 = vpop.permute.xlu0 %1067
    %1069 = vset.pattern.permute.xlu0 0
    %1070 = vperm.xlu0 %1069, %v831
    %v1071 = vpop.permute.xlu0 %1070
    %1072 = vset.pattern.permute.xlu0 0
    %1073 = vperm.xlu0 %1072, %v832
    %v1074 = vpop.permute.xlu0 %1073
    %1075 = vset.pattern.permute.xlu0 0
    %1076 = vperm.xlu0 %1075, %v833
    %v1077 = vpop.permute.xlu0 %1076
    %1078 = vset.pattern.permute.xlu0 0
    %1079 = vperm.xlu0 %1078, %v834
    %v1080 = vpop.permute.xlu0 %1079
    %1081 = vset.pattern.permute.xlu0 0
    %1082 = vperm.xlu0 %1081, %v835
    %v1083 = vpop.permute.xlu0 %1082
    %1084 = vset.pattern.permute.xlu0 0
    %1085 = vperm.xlu0 %1084, %v836
    %v1086 = vpop.permute.xlu0 %1085
    %1087 = vset.pattern.permute.xlu0 0
    %1088 = vperm.xlu0 %1087, %v837
    %v1089 = vpop.permute.xlu0 %1088
    %1090 = vset.pattern.permute.xlu0 0
    %1091 = vperm.xlu0 %1090, %v838
    %v1092 = vpop.permute.xlu0 %1091
    %1093 = vset.pattern.permute.xlu0 0
    %1094 = vperm.xlu0 %1093, %v839
    %v1095 = vpop.permute.xlu0 %1094
    %v1096 = vlaneseq
    %v1097 = vshrl.u32 %v1096, 7
    %v1098 = vsub.s32 %v333, %v1097
    %v1099 = vrot.slane %v906, %v1098
    %v1100 = vlaneseq
    %v1101 = vshrl.u32 %v1100, 7
    %v1102 = vsub.s32 %v333, %v1101
    %v1103 = vrot.slane %v909, %v1102
    %v1104 = vlaneseq
    %v1105 = vshrl.u32 %v1104, 7
    %v1106 = vsub.s32 %v333, %v1105
    %v1107 = vrot.slane %v912, %v1106
    %v1108 = vlaneseq
    %v1109 = vshrl.u32 %v1108, 7
    %v1110 = vsub.s32 %v333, %v1109
    %v1111 = vrot.slane %v915, %v1110
    %v1112 = vlaneseq
    %v1113 = vshrl.u32 %v1112, 7
    %v1114 = vsub.s32 %v333, %v1113
    %v1115 = vrot.slane %v918, %v1114
    %v1116 = vlaneseq
    %v1117 = vshrl.u32 %v1116, 7
    %v1118 = vsub.s32 %v333, %v1117
    %v1119 = vrot.slane %v921, %v1118
    %v1120 = vlaneseq
    %v1121 = vshrl.u32 %v1120, 7
    %v1122 = vsub.s32 %v333, %v1121
    %v1123 = vrot.slane %v924, %v1122
    %v1124 = vlaneseq
    %v1125 = vshrl.u32 %v1124, 7
    %v1126 = vsub.s32 %v333, %v1125
    %v1127 = vrot.slane %v927, %v1126
    %v1128 = vlaneseq
    %v1129 = vshrl.u32 %v1128, 7
    %v1130 = vsub.s32 %v333, %v1129
    %v1131 = vrot.slane %v930, %v1130
    %v1132 = vlaneseq
    %v1133 = vshrl.u32 %v1132, 7
    %v1134 = vsub.s32 %v333, %v1133
    %v1135 = vrot.slane %v933, %v1134
    %v1136 = vlaneseq
    %v1137 = vshrl.u32 %v1136, 7
    %v1138 = vsub.s32 %v333, %v1137
    %v1139 = vrot.slane %v936, %v1138
    %v1140 = vlaneseq
    %v1141 = vshrl.u32 %v1140, 7
    %v1142 = vsub.s32 %v333, %v1141
    %v1143 = vrot.slane %v939, %v1142
    %v1144 = vlaneseq
    %v1145 = vshrl.u32 %v1144, 7
    %v1146 = vsub.s32 %v333, %v1145
    %v1147 = vrot.slane %v942, %v1146
    %v1148 = vlaneseq
    %v1149 = vshrl.u32 %v1148, 7
    %v1150 = vsub.s32 %v333, %v1149
    %v1151 = vrot.slane %v945, %v1150
    %v1152 = vlaneseq
    %v1153 = vshrl.u32 %v1152, 7
    %v1154 = vsub.s32 %v333, %v1153
    %v1155 = vrot.slane %v948, %v1154
    %v1156 = vlaneseq
    %v1157 = vshrl.u32 %v1156, 7
    %v1158 = vsub.s32 %v333, %v1157
    %v1159 = vrot.slane %v951, %v1158
    %v1160 = vlaneseq
    %v1161 = vshrl.u32 %v1160, 7
    %v1162 = vsub.s32 %v333, %v1161
    %v1163 = vrot.slane %v954, %v1162
    %v1164 = vlaneseq
    %v1165 = vshrl.u32 %v1164, 7
    %v1166 = vsub.s32 %v333, %v1165
    %v1167 = vrot.slane %v957, %v1166
    %v1168 = vlaneseq
    %v1169 = vshrl.u32 %v1168, 7
    %v1170 = vsub.s32 %v333, %v1169
    %v1171 = vrot.slane %v960, %v1170
    %v1172 = vlaneseq
    %v1173 = vshrl.u32 %v1172, 7
    %v1174 = vsub.s32 %v333, %v1173
    %v1175 = vrot.slane %v963, %v1174
    %v1176 = vlaneseq
    %v1177 = vshrl.u32 %v1176, 7
    %v1178 = vsub.s32 %v333, %v1177
    %v1179 = vrot.slane %v966, %v1178
    %v1180 = vlaneseq
    %v1181 = vshrl.u32 %v1180, 7
    %v1182 = vsub.s32 %v333, %v1181
    %v1183 = vrot.slane %v969, %v1182
    %v1184 = vlaneseq
    %v1185 = vshrl.u32 %v1184, 7
    %v1186 = vsub.s32 %v333, %v1185
    %v1187 = vrot.slane %v972, %v1186
    %v1188 = vlaneseq
    %v1189 = vshrl.u32 %v1188, 7
    %v1190 = vsub.s32 %v333, %v1189
    %v1191 = vrot.slane %v975, %v1190
    %v1192 = vlaneseq
    %v1193 = vshrl.u32 %v1192, 7
    %v1194 = vsub.s32 %v333, %v1193
    %v1195 = vrot.slane %v978, %v1194
    %v1196 = vlaneseq
    %v1197 = vshrl.u32 %v1196, 7
    %v1198 = vsub.s32 %v333, %v1197
    %v1199 = vrot.slane %v981, %v1198
    %v1200 = vlaneseq
    %v1201 = vshrl.u32 %v1200, 7
    %v1202 = vsub.s32 %v333, %v1201
    %v1203 = vrot.slane %v984, %v1202
    %v1204 = vlaneseq
    %v1205 = vshrl.u32 %v1204, 7
    %v1206 = vsub.s32 %v333, %v1205
    %v1207 = vrot.slane %v987, %v1206
    %v1208 = vlaneseq
    %v1209 = vshrl.u32 %v1208, 7
    %v1210 = vsub.s32 %v333, %v1209
    %v1211 = vrot.slane %v990, %v1210
    %v1212 = vlaneseq
    %v1213 = vshrl.u32 %v1212, 7
    %v1214 = vsub.s32 %v333, %v1213
    %v1215 = vrot.slane %v993, %v1214
    %v1216 = vlaneseq
    %v1217 = vshrl.u32 %v1216, 7
    %v1218 = vsub.s32 %v333, %v1217
    %v1219 = vrot.slane %v996, %v1218
    %v1220 = vlaneseq
    %v1221 = vshrl.u32 %v1220, 7
    %v1222 = vsub.s32 %v333, %v1221
    %v1223 = vrot.slane %v999, %v1222
    %v1224 = vlaneseq
    %v1225 = vshrl.u32 %v1224, 7
    %v1226 = vsub.s32 %v333, %v1225
    %v1227 = vrot.slane %v1002, %v1226
    %v1228 = vlaneseq
    %v1229 = vshrl.u32 %v1228, 7
    %v1230 = vsub.s32 %v333, %v1229
    %v1231 = vrot.slane %v1005, %v1230
    %v1232 = vlaneseq
    %v1233 = vshrl.u32 %v1232, 7
    %v1234 = vsub.s32 %v333, %v1233
    %v1235 = vrot.slane %v1008, %v1234
    %v1236 = vlaneseq
    %v1237 = vshrl.u32 %v1236, 7
    %v1238 = vsub.s32 %v333, %v1237
    %v1239 = vrot.slane %v1011, %v1238
    %v1240 = vlaneseq
    %v1241 = vshrl.u32 %v1240, 7
    %v1242 = vsub.s32 %v333, %v1241
    %v1243 = vrot.slane %v1014, %v1242
    %v1244 = vlaneseq
    %v1245 = vshrl.u32 %v1244, 7
    %v1246 = vsub.s32 %v333, %v1245
    %v1247 = vrot.slane %v1017, %v1246
    %v1248 = vlaneseq
    %v1249 = vshrl.u32 %v1248, 7
    %v1250 = vsub.s32 %v333, %v1249
    %v1251 = vrot.slane %v1020, %v1250
    %v1252 = vlaneseq
    %v1253 = vshrl.u32 %v1252, 7
    %v1254 = vsub.s32 %v333, %v1253
    %v1255 = vrot.slane %v1023, %v1254
    %v1256 = vlaneseq
    %v1257 = vshrl.u32 %v1256, 7
    %v1258 = vsub.s32 %v333, %v1257
    %v1259 = vrot.slane %v1026, %v1258
    %v1260 = vlaneseq
    %v1261 = vshrl.u32 %v1260, 7
    %v1262 = vsub.s32 %v333, %v1261
    %v1263 = vrot.slane %v1029, %v1262
    %v1264 = vlaneseq
    %v1265 = vshrl.u32 %v1264, 7
    %v1266 = vsub.s32 %v333, %v1265
    %v1267 = vrot.slane %v1032, %v1266
    %v1268 = vlaneseq
    %v1269 = vshrl.u32 %v1268, 7
    %v1270 = vsub.s32 %v333, %v1269
    %v1271 = vrot.slane %v1035, %v1270
    %v1272 = vlaneseq
    %v1273 = vshrl.u32 %v1272, 7
    %v1274 = vsub.s32 %v333, %v1273
    %v1275 = vrot.slane %v1038, %v1274
    %v1276 = vlaneseq
    %v1277 = vshrl.u32 %v1276, 7
    %v1278 = vsub.s32 %v333, %v1277
    %v1279 = vrot.slane %v1041, %v1278
    %v1280 = vlaneseq
    %v1281 = vshrl.u32 %v1280, 7
    %v1282 = vsub.s32 %v333, %v1281
    %v1283 = vrot.slane %v1044, %v1282
    %v1284 = vlaneseq
    %v1285 = vshrl.u32 %v1284, 7
    %v1286 = vsub.s32 %v333, %v1285
    %v1287 = vrot.slane %v1047, %v1286
    %v1288 = vlaneseq
    %v1289 = vshrl.u32 %v1288, 7
    %v1290 = vsub.s32 %v333, %v1289
    %v1291 = vrot.slane %v1050, %v1290
    %v1292 = vlaneseq
    %v1293 = vshrl.u32 %v1292, 7
    %v1294 = vsub.s32 %v333, %v1293
    %v1295 = vrot.slane %v1053, %v1294
    %v1296 = vlaneseq
    %v1297 = vshrl.u32 %v1296, 7
    %v1298 = vsub.s32 %v333, %v1297
    %v1299 = vrot.slane %v1056, %v1298
    %v1300 = vlaneseq
    %v1301 = vshrl.u32 %v1300, 7
    %v1302 = vsub.s32 %v333, %v1301
    %v1303 = vrot.slane %v1059, %v1302
    %v1304 = vlaneseq
    %v1305 = vshrl.u32 %v1304, 7
    %v1306 = vsub.s32 %v333, %v1305
    %v1307 = vrot.slane %v1062, %v1306
    %v1308 = vlaneseq
    %v1309 = vshrl.u32 %v1308, 7
    %v1310 = vsub.s32 %v333, %v1309
    %v1311 = vrot.slane %v1065, %v1310
    %v1312 = vlaneseq
    %v1313 = vshrl.u32 %v1312, 7
    %v1314 = vsub.s32 %v333, %v1313
    %v1315 = vrot.slane %v1068, %v1314
    %v1316 = vlaneseq
    %v1317 = vshrl.u32 %v1316, 7
    %v1318 = vsub.s32 %v333, %v1317
    %v1319 = vrot.slane %v1071, %v1318
    %v1320 = vlaneseq
    %v1321 = vshrl.u32 %v1320, 7
    %v1322 = vsub.s32 %v333, %v1321
    %v1323 = vrot.slane %v1074, %v1322
    %v1324 = vlaneseq
    %v1325 = vshrl.u32 %v1324, 7
    %v1326 = vsub.s32 %v333, %v1325
    %v1327 = vrot.slane %v1077, %v1326
    %v1328 = vlaneseq
    %v1329 = vshrl.u32 %v1328, 7
    %v1330 = vsub.s32 %v333, %v1329
    %v1331 = vrot.slane %v1080, %v1330
    %v1332 = vlaneseq
    %v1333 = vshrl.u32 %v1332, 7
    %v1334 = vsub.s32 %v333, %v1333
    %v1335 = vrot.slane %v1083, %v1334
    %v1336 = vlaneseq
    %v1337 = vshrl.u32 %v1336, 7
    %v1338 = vsub.s32 %v333, %v1337
    %v1339 = vrot.slane %v1086, %v1338
    %v1340 = vlaneseq
    %v1341 = vshrl.u32 %v1340, 7
    %v1342 = vsub.s32 %v333, %v1341
    %v1343 = vrot.slane %v1089, %v1342
    %v1344 = vlaneseq
    %v1345 = vshrl.u32 %v1344, 7
    %v1346 = vsub.s32 %v333, %v1345
    %v1347 = vrot.slane %v1092, %v1346
    %v1348 = vlaneseq
    %v1349 = vshrl.u32 %v1348, 7
    %v1350 = vsub.s32 %v333, %v1349
    %v1351 = vrot.slane %v1095, %v1350
    %v1352 = vsel %vm492, %v1103, %v1099
    %v1353 = vsel %vm494, %v1107, %v1352
    %v1354 = vsel %vm496, %v1111, %v1353
    %vm1355 = vcmask 1044484
    %v1356 = vsel %vm1355, %v1115, %v1354
    %vm1357 = vcmask 1045509
    %v1358 = vsel %vm1357, %v1119, %v1356
    %vm1359 = vcmask 1046534
    %v1360 = vsel %vm1359, %v1123, %v1358
    %vm1361 = vcmask 1047559
    %v1362 = vsel %vm1361, %v1127, %v1360
    %v1363 = vsel %vm492, %v1135, %v1131
    %v1364 = vsel %vm494, %v1139, %v1363
    %v1365 = vsel %vm496, %v1143, %v1364
    %v1366 = vsel %vm1355, %v1147, %v1365
    %v1367 = vsel %vm1357, %v1151, %v1366
    %v1368 = vsel %vm1359, %v1155, %v1367
    %v1369 = vsel %vm1361, %v1159, %v1368
    %v1370 = vsel %vm492, %v1167, %v1163
    %v1371 = vsel %vm494, %v1171, %v1370
    %v1372 = vsel %vm496, %v1175, %v1371
    %v1373 = vsel %vm1355, %v1179, %v1372
    %v1374 = vsel %vm1357, %v1183, %v1373
    %v1375 = vsel %vm1359, %v1187, %v1374
    %v1376 = vsel %vm1361, %v1191, %v1375
    %v1377 = vsel %vm492, %v1199, %v1195
    %v1378 = vsel %vm494, %v1203, %v1377
    %v1379 = vsel %vm496, %v1207, %v1378
    %v1380 = vsel %vm1355, %v1211, %v1379
    %v1381 = vsel %vm1357, %v1215, %v1380
    %v1382 = vsel %vm1359, %v1219, %v1381
    %v1383 = vsel %vm1361, %v1223, %v1382
    %v1384 = vsel %vm492, %v1231, %v1227
    %v1385 = vsel %vm494, %v1235, %v1384
    %v1386 = vsel %vm496, %v1239, %v1385
    %v1387 = vsel %vm1355, %v1243, %v1386
    %v1388 = vsel %vm1357, %v1247, %v1387
    %v1389 = vsel %vm1359, %v1251, %v1388
    %v1390 = vsel %vm1361, %v1255, %v1389
    %v1391 = vsel %vm492, %v1263, %v1259
    %v1392 = vsel %vm494, %v1267, %v1391
    %v1393 = vsel %vm496, %v1271, %v1392
    %v1394 = vsel %vm1355, %v1275, %v1393
    %v1395 = vsel %vm1357, %v1279, %v1394
    %v1396 = vsel %vm1359, %v1283, %v1395
    %v1397 = vsel %vm1361, %v1287, %v1396
    %v1398 = vsel %vm492, %v1295, %v1291
    %v1399 = vsel %vm494, %v1299, %v1398
    %v1400 = vsel %vm496, %v1303, %v1399
    %v1401 = vsel %vm1355, %v1307, %v1400
    %v1402 = vsel %vm1357, %v1311, %v1401
    %v1403 = vsel %vm1359, %v1315, %v1402
    %v1404 = vsel %vm1361, %v1319, %v1403
    %v1405 = vsel %vm492, %v1327, %v1323
    %v1406 = vsel %vm494, %v1331, %v1405
    %v1407 = vsel %vm496, %v1335, %v1406
    %v1408 = vsel %vm1355, %v1339, %v1407
    %v1409 = vsel %vm1357, %v1343, %v1408
    %v1410 = vsel %vm1359, %v1347, %v1409
    %v1411 = vsel %vm1361, %v1351, %v1410
    %vm1420 = vcmask 31744
    %v1421 = vsel %vm1420, %v1362, 0.0
    %1422 = vadd.xlane.f32.xlu0 %v1421
    %v1423 = vpop.xlane.xlu0 %1422
    %v1424 = vsel %vm1420, %v1369, 0.0
    %1425 = vadd.xlane.f32.xlu0 %v1424
    %v1426 = vpop.xlane.xlu0 %1425
    %v1427 = vsel %vm1420, %v1376, 0.0
    %1428 = vadd.xlane.f32.xlu0 %v1427
    %v1429 = vpop.xlane.xlu0 %1428
    %v1430 = vsel %vm1420, %v1383, 0.0
    %1431 = vadd.xlane.f32.xlu0 %v1430
    %v1432 = vpop.xlane.xlu0 %1431
    %v1433 = vsel %vm1420, %v1390, 0.0
    %1434 = vadd.xlane.f32.xlu0 %v1433
    %v1435 = vpop.xlane.xlu0 %1434
    %v1436 = vsel %vm1420, %v1397, 0.0
    %1437 = vadd.xlane.f32.xlu0 %v1436
    %v1438 = vpop.xlane.xlu0 %1437
    %v1439 = vsel %vm1420, %v1404, 0.0
    %1440 = vadd.xlane.f32.xlu0 %v1439
    %v1441 = vpop.xlane.xlu0 %1440
    %v1442 = vsel %vm1420, %v1411, 0.0
    %1443 = vadd.xlane.f32.xlu0 %v1442
    %v1444 = vpop.xlane.xlu0 %1443
    %v1445 = vxor.u32 %v1423, 2147483648
    %v1446 = vxor.u32 %v1426, 2147483648
    %v1447 = vxor.u32 %v1429, 2147483648
    %v1448 = vxor.u32 %v1432, 2147483648
    %v1449 = vxor.u32 %v1435, 2147483648
    %v1450 = vxor.u32 %v1438, 2147483648
    %v1451 = vxor.u32 %v1441, 2147483648
    %v1452 = vxor.u32 %v1444, 2147483648
    %v1453 = vmul.f32 %v1445, 1.442695
    %v1454 = vpow.pop %v1453
    %v1455 = vmul.f32 %v1446, 1.442695
    %v1456 = vpow.pop %v1455
    %v1457 = vmul.f32 %v1447, 1.442695
    %v1458 = vpow.pop %v1457
    %v1459 = vmul.f32 %v1448, 1.442695
    %v1460 = vpow.pop %v1459
    %v1461 = vmul.f32 %v1449, 1.442695
    %v1462 = vpow.pop %v1461
    %v1463 = vmul.f32 %v1450, 1.442695
    %v1464 = vpow.pop %v1463
    %v1465 = vmul.f32 %v1451, 1.442695
    %v1466 = vpow.pop %v1465
    %v1467 = vmul.f32 %v1452, 1.442695
    %v1468 = vpow.pop %v1467
    %v1469 = vadd.f32 %v1454, 1.0
    %v1470 = vadd.f32 %v1456, 1.0
    %v1471 = vadd.f32 %v1458, 1.0
    %v1472 = vadd.f32 %v1460, 1.0
    %v1473 = vadd.f32 %v1462, 1.0
    %v1474 = vadd.f32 %v1464, 1.0
    %v1475 = vadd.f32 %v1466, 1.0
    %v1476 = vadd.f32 %v1468, 1.0
    %v1477 = vrcp.pop %v1469
    %v1478 = vmul.f32 1.0, %v1477
    %v1479 = vrcp.pop %v1470
    %v1480 = vmul.f32 1.0, %v1479
    %v1481 = vrcp.pop %v1471
    %v1482 = vmul.f32 1.0, %v1481
    %v1483 = vrcp.pop %v1472
    %v1484 = vmul.f32 1.0, %v1483
    %v1485 = vrcp.pop %v1473
    %v1486 = vmul.f32 1.0, %v1485
    %v1487 = vrcp.pop %v1474
    %v1488 = vmul.f32 1.0, %v1487
    %v1489 = vrcp.pop %v1475
    %v1490 = vmul.f32 1.0, %v1489
    %v1491 = vrcp.pop %v1476
    %v1492 = vmul.f32 1.0, %v1491
    %v1493 = vmul.f32 %v29, %v1478
    %v1494 = vmul.f32 %v30, %v1478
    %v1495 = vmul.f32 %v31, %v1480
    %v1496 = vmul.f32 %v32, %v1480
    %v1497 = vmul.f32 %v33, %v1482
    %v1498 = vmul.f32 %v34, %v1482
    %v1499 = vmul.f32 %v35, %v1484
    %v1500 = vmul.f32 %v36, %v1484
    %v1501 = vmul.f32 %v37, %v1486
    %v1502 = vmul.f32 %v38, %v1486
    %v1503 = vmul.f32 %v39, %v1488
    %v1504 = vmul.f32 %v40, %v1488
    %v1505 = vmul.f32 %v41, %v1490
    %v1506 = vmul.f32 %v42, %v1490
    %v1507 = vmul.f32 %v43, %v1492
    %v1508 = vmul.f32 %v44, %v1492
    %1509 = vst [vmem:[#allocation5] sm:$0xff] %v1493
    %1510 = vst [vmem:[#allocation5 + $0x8] sm:$0xff] %v1494
    %1511 = vst [vmem:[#allocation5 + $0x10] sm:$0xff] %v1495
    %1512 = vst [vmem:[#allocation5 + $0x18] sm:$0xff] %v1496
    %1513 = vst [vmem:[#allocation5 + $0x20] sm:$0xff] %v1497
    %1514 = vst [vmem:[#allocation5 + $0x28] sm:$0xff] %v1498
    %1515 = vst [vmem:[#allocation5 + $0x30] sm:$0xff] %v1499
    %1516 = vst [vmem:[#allocation5 + $0x38] sm:$0xff] %v1500
    %1517 = vst [vmem:[#allocation5 + $0x40] sm:$0xff] %v1501
    %1518 = vst [vmem:[#allocation5 + $0x48] sm:$0xff] %v1502
    %1519 = vst [vmem:[#allocation5 + $0x50] sm:$0xff] %v1503
    %1520 = vst [vmem:[#allocation5 + $0x58] sm:$0xff] %v1504
    %1521 = vst [vmem:[#allocation5 + $0x60] sm:$0xff] %v1505
    %1522 = vst [vmem:[#allocation5 + $0x68] sm:$0xff] %v1506
    %1523 = vst [vmem:[#allocation5 + $0x70] sm:$0xff] %v1507
    %1524 = vst [vmem:[#allocation5 + $0x78] sm:$0xff] %v1508
    // Predicated region
    $region18: #{tpu_custom_call.1} parent=1 // pred_check
      _
    $region19: #{tpu_custom_call.1} parent=1 // pred_check_branch
      %1526 = sbr.rel (0) target = $region21
    $region20: #{tpu_custom_call.1} parent=1 // pred_region
      %s1528 = ssub.s32 2048, 2048
      %1529 = vsyncadd [#allocation4], %s1528
      %s1530 = sshll.u32 [#allocation5], 4
      %s1531 = int_to_ptr.vmem [resolvable:$true] %s1530
      %1536 = dma.vmem_to_hbm [thread:$0]  %s1531, 2048, %s3, [#allocation4], 256, 256, 16
    $region21: #{tpu_custom_call.1} parent=1 // pred_fallthru
      _
    // Predicated region
    $region22: #{tpu_custom_call.1} parent=1 // pred_check
      _
    $region23: #{tpu_custom_call.1} parent=1 // pred_check_branch
      %1538 = sbr.rel (0) target = $region25
    $region24: #{tpu_custom_call.1} parent=1 // pred_region
      %1539 = dma.done [#allocation4], 2048
    $region25: #{tpu_custom_call.1} parent=1 // pred_fallthru
      _
    %1540 = vsyncpa [#allocation3], 1
    %1541 = vsyncpa [#allocation4], 1

</llo_original>
